<compile_context>
chip_gen: v6e
topology: v6e:2x2x1
jax: 0.10.0
libtpu: 0.0.40
codegen_flags: <defaults>
</compile_context>

<pallas_src>
import functools
import numpy as np
import jax
import jax.numpy as jnp
from jax import lax
from jax.experimental import pallas as pl
from jax.experimental.pallas import tpu as pltpu


def _per_graph_vmem_bytes(n_pad):
    # double-buffered input blocks per graph: bf16 adj (N*N*2) + f32 x_aug (128-lane pad)
    blocks = 2 * (2 * n_pad * n_pad + 4 * n_pad * 128)
    # largest live f32 temporaries per graph: adj upcast + xw/sh slab (128-lane pad)
    live = 4 * n_pad * n_pad + 4 * n_pad * 128
    return blocks + live


def _choose_graphs_per_step(batch, n_pad, vmem_budget_bytes=20 << 20, max_unrolled=8):
    per_graph = _per_graph_vmem_bytes(n_pad)
    g_vmem = max(1, vmem_budget_bytes // per_graph)
    # keep >= 8 grid steps (>= 4 per TensorCore on v7x) when the batch allows
    g_steps = batch // 8 if batch >= 8 else batch
    cap = max(1, min(g_vmem, g_steps, max_unrolled))
    divisors = [d for d in range(1, batch + 1) if batch % d == 0 and d <= cap]
    even_steps = [d for d in divisors if (batch // d) % 2 == 0]
    return max(even_steps) if even_steps else max(divisors)


def _diffpool_reg_kernel(counts_ref,                 # SMEM scalar prefetch: (B,) valid-node counts
                         x_ref, adj_ref,             # per-step blocks
                         wcat_ref, bcat_ref,         # fused gnn_pool|gnn1_embed: (F+1) -> (K+H)
                         w2_ref, b2_ref,             # gnn2_embed: H -> H
                         pooled_ref,                 # (G, 1, H) add-pooled cluster embeddings
                         *, num_clusters):
    f32 = jnp.float32
    G, N, _ = adj_ref.shape
    F = x_ref.shape[2] - 1          # last x column carries diag(adj)
    K = num_clusters
    H = w2_ref.shape[1]
    dn_t = (((0,), (0,)), ((), ()))  # contract over the node axis (s^T-style dots)

    # Hoisted weight loads / bias broadcasts (JAX does not CSE broadcast_in_dim in the
    # unrolled loop, so broadcast once here).
    wcat = wcat_ref[...]
    w2 = w2_ref[...]
    bcat = jnp.broadcast_to(bcat_ref[...], (N, K + H))
    b2 = jnp.broadcast_to(b2_ref[...], (K, H))

    # tiny (K, K) diagonal mask for the pooled graph's self-loops
    diag_k = (lax.broadcasted_iota(jnp.int32, (K, K), 0)
              == lax.broadcasted_iota(jnp.int32, (K, K), 1))
    row_id = lax.broadcasted_iota(jnp.int32, (N, 1), 0)
    base = pl.program_id(0) * G

    rows = []
    for g in range(G):   # G <= 8 (wrapper-enforced): full unroll keeps vreg pressure bounded
        adj = adj_ref[g].astype(f32)                 # bf16 HBM stream, exact for adjacency ints
        x_aug = x_ref[g]                             # (N, F+1); last column = diag(adj)
        d = x_aug[:, F:F + 1]                        # (N, 1) original adjacency diagonal
        mask = (row_id < counts_ref[base + g]).astype(f32)   # (N, 1) valid-node mask

        # fused gnn_pool | gnn1_embed feature transform (zero weight row eats the diag col)
        xw = jnp.dot(x_aug, wcat, preferred_element_type=f32)        # (N, K+H)

        # DenseGCNConv normalization, applied lazily (no eye / a_sl materialization):
        #   D^-1/2 (A_offdiag + I) D^-1/2 @ z  ==  dis * (adj @ (dis*z) + (1-d)*(dis*z))
        deg = jnp.sum(adj, axis=-1, keepdims=True) - d + 1.0
        dis = lax.rsqrt(jnp.maximum(deg, 1.0))                        # deg.clamp(min=1)**-0.5
        z = dis * xw
        sh = dis * (jnp.dot(adj, z, preferred_element_type=f32) + (1.0 - d) * z) + bcat
        s_logits = sh[:, :K]                                          # gnn_pool output
        h1 = sh[:, K:]                                                # gnn1_embed output
        # NOTE: DenseGCNConv's / dense_diff_pool's explicit masking of h1 is redundant
        # here because the post-softmax mask on s zeroes padded rows before every use of
        # h1 / adj below. Keep this invariant if the kernel is ever extended.

        # ---- dense_diff_pool (link/entropy losses unused by forward -> omitted) ----
        s = jax.nn.softmax(s_logits, axis=-1) * mask                  # (N, K)
        x_p = lax.dot_general(s, h1, dn_t, preferred_element_type=f32)   # s^T h1  (K, H)
        sa = lax.dot_general(s, adj, dn_t, preferred_element_type=f32)   # s^T A   (K, N)
        adj_p = jnp.dot(sa, s, preferred_element_type=f32)               # s^T A s (K, K)

        # ---- gnn2_embed: DenseGCNConv(H -> H) on the pooled graph (K x K is tiny) ----
        a2 = jnp.where(diag_k, 1.0, adj_p)
        deg2 = jnp.sum(a2, axis=-1, keepdims=True)
        dis2 = lax.rsqrt(jnp.maximum(deg2, 1.0))
        xw2 = jnp.dot(x_p, w2, preferred_element_type=f32)
        h2 = dis2 * jnp.dot(a2, dis2 * xw2, preferred_element_type=f32) + b2

        # global_add_pool over clusters
        rows.append(jnp.sum(h2, axis=0, keepdims=True))               # (1, H)

    # single (G, 1, H) store per grid step instead of G masked row stores
    pooled_ref[...] = jnp.stack(rows, axis=0)


def diffpool_reg_forward(x_dense, adj, mask, params, *, graphs_per_step=None):
    B, N, F = x_dense.shape
    K = params["wp"].shape[1]
    H = params["w1"].shape[1]

    # per-graph valid-node counts -> SMEM scalar prefetch (replaces the (B,N,1) mask stream)
    counts = jnp.sum(mask, axis=1).astype(jnp.int32)                   # (B,)

    # diag(adj) carried as an extra feature column of x (free: x lane dim pads to 128)
    adj_diag = jnp.diagonal(adj, axis1=1, axis2=2)                     # (B, N)
    x_aug = jnp.concatenate([x_dense, adj_diag[:, :, None]], axis=-1)  # (B, N, F+1)

    # fused gnn_pool|gnn1_embed weights, plus a zero row so the diag column is ignored
    w_cat = jnp.concatenate([params["wp"], params["w1"]], axis=1)      # (F, K+H)
    w_cat = jnp.concatenate([w_cat, jnp.zeros((1, K + H), w_cat.dtype)], axis=0)
    b_cat = jnp.concatenate([params["bp"], params["b1"]], axis=1)      # (1, K+H)

    # pad N to an (8,128)-friendly size (128 for large graphs keeps adj lanes unmasked)
    mult = 128 if N >= 128 else 8
    Np = -(-N // mult) * mult
    if Np != N:
        x_aug = jnp.pad(x_aug, ((0, 0), (0, Np - N), (0, 0)))
        adj = jnp.pad(adj, ((0, 0), (0, Np - N), (0, Np - N)))

    # bf16 adjacency stream: halves HBM DMA and the double-buffered block; 0/1 entries
    # are exact so the in-kernel f32 upcast reproduces f32 semantics bit-for-bit.
    adj_bf = adj.astype(jnp.bfloat16)

    if graphs_per_step is None:
        graphs_per_step = _choose_graphs_per_step(B, Np)
    G = graphs_per_step
    assert B % G == 0, "graphs_per_step must divide the batch size"
    num_steps = B // G

    per_graph = _per_graph_vmem_bytes(Np)
    vmem_limit = int(min(48 << 20, max(32 << 20, G * per_graph + (4 << 20))))

    kernel = functools.partial(_diffpool_reg_kernel, num_clusters=K)

    def per_step(shape):   # G graphs per grid step, full extent in the trailing dims
        return pl.BlockSpec((G,) + shape, lambda i, c: (i,) + (0,) * len(shape))

    def full(arr):         # same full-array block every grid step (weights / biases)
        return pl.BlockSpec(arr.shape, lambda i, c: (0,) * arr.ndim)

    pooled = pl.pallas_call(
        kernel,
        out_shape=jax.ShapeDtypeStruct((B, 1, H), jnp.float32),
        grid_spec=pltpu.PrefetchScalarGridSpec(
            num_scalar_prefetch=1,
            grid=(num_steps,),
            in_specs=[
                per_step((Np, F + 1)),
                per_step((Np, Np)),
                full(w_cat), full(b_cat),
                full(params["w2"]), full(params["b2"]),
            ],
            out_specs=pl.BlockSpec((G, 1, H), lambda i, c: (i, 0, 0)),
        ),
        compiler_params=pltpu.CompilerParams(
            dimension_semantics=("parallel",),
            vmem_limit_bytes=vmem_limit),
    )(counts, x_aug, adj_bf, w_cat, b_cat, params["w2"], params["b2"])

    # global_add_pool result comes out lane-dense; the tiny Linear(H->1) runs here.
    pooled = pooled.reshape(B, H)
    return pooled @ params["wl"] + params["bl"]


def reference_forward(x_dense, adj, mask, params):
    # pure-JAX reference of the same forward semantics (for validation)
    def gcn(x, a, w, bias, m=None):
        B, N, _ = a.shape
        eye = jnp.eye(N, dtype=jnp.float32)[None]
        a_sl = a * (1.0 - eye) + eye
        deg = jnp.maximum(a_sl.sum(-1), 1.0)
        dis = deg ** -0.5
        a_n = dis[:, :, None] * a_sl * dis[:, None, :]
        out = jnp.einsum('bnm,bmf->bnf', a_n, x @ w) + bias
        if m is not None:
            out = out * m[..., None]
        return out

    s = gcn(x_dense, adj, params['wp'], params['bp'], mask)
    h1 = gcn(x_dense, adj, params['w1'], params['b1'], mask)
    s = jax.nn.softmax(s, -1) * mask[..., None]
    h1 = h1 * mask[..., None]
    x_p = jnp.einsum('bnk,bnh->bkh', s, h1)
    adj_p = jnp.einsum('bnk,bnm,bml->bkl', s, adj, s)
    h2 = gcn(x_p, adj_p, params['w2'], params['b2'])
    pooled = h2.sum(1)
    return pooled @ params['wl'] + params['bl']


if __name__ == "__main__":
    F_in, H, K = 4, 32, 5
    # two small undirected ring graphs: 16 nodes and 12 nodes
    sizes = [16, 12]
    B = len(sizes)
    N_max = max(sizes)

    batch_np = np.concatenate([np.full(n, i) for i, n in enumerate(sizes)]).astype(np.int32)
    pos_np = np.concatenate([np.arange(n) for n in sizes]).astype(np.int32)
    edges = []
    off = 0
    for n in sizes:
        src = np.arange(n) + off
        dst = (np.arange(n) + 1) % n + off
        edges.append(np.stack([np.concatenate([src, dst]), np.concatenate([dst, src])]))
        off += n
    edge_index_np = np.concatenate(edges, axis=1).astype(np.int32)
    n_total = int(batch_np.shape[0])

    key = jax.random.PRNGKey(0)
    kx, kp, k1, k2, kl, kb = jax.random.split(key, 6)
    x = jax.random.normal(kx, (n_total, F_in), jnp.float32)

    # ---- to_dense_batch / to_dense_adj (data-dependent scatter: plain-JAX glue) ----
    batch = jnp.asarray(batch_np)
    pos = jnp.asarray(pos_np)
    edge_index = jnp.asarray(edge_index_np)
    x_dense = jnp.zeros((B, N_max, F_in), jnp.float32).at[batch, pos].set(x)
    mask = jnp.zeros((B, N_max), jnp.float32).at[batch, pos].set(1.0)
    row, col = edge_index[0], edge_index[1]
    adj = jnp.zeros((B, N_max, N_max), jnp.float32).at[batch[row], pos[row], pos[col]].add(1.0)

    # ---- deterministic parameter init (glorot weights, zero/small biases) ----
    def glorot(k, shape):
        lim = np.sqrt(6.0 / (shape[0] + shape[1]))
        return jax.random.uniform(k, shape, jnp.float32, -lim, lim)

    params = {
        "wp": glorot(kp, (F_in, K)), "bp": jnp.zeros((1, K), jnp.float32),
        "w1": glorot(k1, (F_in, H)), "b1": jnp.zeros((1, H), jnp.float32),
        "w2": glorot(k2, (H, H)),    "b2": jnp.zeros((1, H), jnp.float32),
        "wl": glorot(kl, (H, 1)),
        "bl": jax.random.uniform(kb, (1, 1), jnp.float32, -0.1, 0.1),
    }

    out = jax.block_until_ready(diffpool_reg_forward(x_dense, adj, mask, params))
    ref = jax.block_until_ready(reference_forward(x_dense, adj, mask, params))
    assert out.shape == (B, 1)
    np.testing.assert_allclose(np.asarray(out), np.asarray(ref), rtol=1e-4, atol=1e-4)
    print("KERNEL_OK")
</pallas_src>

<mosaic_0001>
module attributes {stable_mosaic.version = 11 : i64} {
  func.func @_diffpool_reg_kernel(%arg0: i32, %arg1: memref<2xi32, #tpu.memory_space<smem>>, %arg2: memref<1x16x5xf32, #tpu.memory_space<vmem>>, %arg3: memref<1x16x16xbf16, #tpu.memory_space<vmem>>, %arg4: memref<5x37xf32, #tpu.memory_space<vmem>>, %arg5: memref<1x37xf32, #tpu.memory_space<vmem>>, %arg6: memref<32x32xf32, #tpu.memory_space<vmem>>, %arg7: memref<1x32xf32, #tpu.memory_space<vmem>>, %arg8: memref<1x1x32xf32, #tpu.memory_space<vmem>>) attributes {dimension_semantics = [#tpu.dimension_semantics<parallel>], iteration_bounds = array<i64: 2>, scalar_prefetch = 1 : i64, scratch_operands = 0 : i64, tpu.core_type = #tpu.core_type<tc>, window_params = [{transform_indices = @transform_0, window_bounds = array<i64: 1, 16, 5>}, {transform_indices = @transform_1, window_bounds = array<i64: 1, 16, 16>}, {pipeline_mode = #tpu.pipeline_mode<synchronous>, transform_indices = @transform_2, window_bounds = array<i64: 5, 37>}, {pipeline_mode = #tpu.pipeline_mode<synchronous>, transform_indices = @transform_3, window_bounds = array<i64: 1, 37>}, {pipeline_mode = #tpu.pipeline_mode<synchronous>, transform_indices = @transform_4, window_bounds = array<i64: 32, 32>}, {pipeline_mode = #tpu.pipeline_mode<synchronous>, transform_indices = @transform_5, window_bounds = array<i64: 1, 32>}, {transform_indices = @transform_6, window_bounds = array<i64: 1, 1, 32>}]} {
    %c0 = arith.constant 0 : index
    %c0_0 = arith.constant 0 : index
    %0 = vector.load %arg4[%c0, %c0_0] : memref<5x37xf32, #tpu.memory_space<vmem>>, vector<5x37xf32>
    %c0_1 = arith.constant 0 : index
    %c0_2 = arith.constant 0 : index
    %1 = vector.load %arg6[%c0_1, %c0_2] : memref<32x32xf32, #tpu.memory_space<vmem>>, vector<32x32xf32>
    %c0_3 = arith.constant 0 : index
    %c0_4 = arith.constant 0 : index
    %2 = vector.load %arg5[%c0_3, %c0_4] : memref<1x37xf32, #tpu.memory_space<vmem>>, vector<1x37xf32>
    %3 = vector.shape_cast %2 : vector<1x37xf32> to vector<1x37xf32>
    %4 = vector.broadcast %3 : vector<1x37xf32> to vector<16x37xf32>
    %c0_5 = arith.constant 0 : index
    %c0_6 = arith.constant 0 : index
    %5 = vector.load %arg7[%c0_5, %c0_6] : memref<1x32xf32, #tpu.memory_space<vmem>>, vector<1x32xf32>
    %6 = vector.shape_cast %5 : vector<1x32xf32> to vector<1x32xf32>
    %7 = vector.broadcast %6 : vector<1x32xf32> to vector<5x32xf32>
    %8 = tpu.iota {dimensions = array<i32: 0>} : vector<5x5xi32>
    %9 = tpu.iota {dimensions = array<i32: 1>} : vector<5x5xi32>
    %10 = arith.cmpi eq, %8, %9 : vector<5x5xi32>
    %11 = tpu.iota {dimensions = array<i32: 0>} : vector<16x1xi32>
    %c1_i32 = arith.constant 1 : i32
    %12 = arith.muli %arg0, %c1_i32 : i32
    %c0_7 = arith.constant 0 : index
    %c0_8 = arith.constant 0 : index
    %c0_9 = arith.constant 0 : index
    %13 = vector.load %arg3[%c0_7, %c0_8, %c0_9] : memref<1x16x16xbf16, #tpu.memory_space<vmem>>, vector<1x16x16xbf16>
    %14 = vector.shape_cast %13 : vector<1x16x16xbf16> to vector<16x16xbf16>
    %15 = arith.extf %14 : vector<16x16xbf16> to vector<16x16xf32>
    %c0_10 = arith.constant 0 : index
    %c0_11 = arith.constant 0 : index
    %c0_12 = arith.constant 0 : index
    %16 = vector.load %arg2[%c0_10, %c0_11, %c0_12] : memref<1x16x5xf32, #tpu.memory_space<vmem>>, vector<1x16x5xf32>
    %17 = vector.shape_cast %16 : vector<1x16x5xf32> to vector<16x5xf32>
    %18 = vector.extract_strided_slice %17 {offsets = [0, 4], sizes = [16, 1], strides = [1, 1]} : vector<16x5xf32> to vector<16x1xf32>
    %c0_i32 = arith.constant 0 : i32
    %19 = arith.addi %12, %c0_i32 : i32
    %20 = arith.index_cast %19 : i32 to index
    %21 = memref.load %arg1[%20] : memref<2xi32, #tpu.memory_space<smem>>
    %22 = vector.broadcast %21 : i32 to vector<16x1xi32>
    %23 = arith.cmpi slt, %11, %22 : vector<16x1xi32>
    %24 = arith.extui %23 : vector<16x1xi1> to vector<16x1xi32>
    %25 = arith.sitofp %24 : vector<16x1xi32> to vector<16x1xf32>
    %cst = arith.constant dense<0.000000e+00> : vector<16x37xf32>
    %26 = tpu.matmul %17, %0, %cst {dimension_numbers = #tpu.dot_dimension_numbers<[1], [0], [0], [1], [0, 0, 1, 1], [], []>} : vector<16x5xf32>, vector<5x37xf32>, vector<16x37xf32> -> vector<16x37xf32>
    %cst_13 = arith.constant dense<0.000000e+00> : vector<16xf32>
    %27 = vector.multi_reduction <add>, %15, %cst_13 [1] : vector<16x16xf32> to vector<16xf32>
    %28 = vector.shape_cast %27 : vector<16xf32> to vector<16x1xf32>
    %29 = arith.subf %28, %18 : vector<16x1xf32>
    %cst_14 = arith.constant 1.000000e+00 : f32
    %30 = vector.broadcast %cst_14 : f32 to vector<16x1xf32>
    %31 = arith.addf %29, %30 : vector<16x1xf32>
    %cst_15 = arith.constant 1.000000e+00 : f32
    %32 = vector.broadcast %cst_15 : f32 to vector<16x1xf32>
    %33 = arith.maximumf %31, %32 : vector<16x1xf32>
    %34 = math.rsqrt %33 : vector<16x1xf32>
    %35 = vector.broadcast %34 : vector<16x1xf32> to vector<16x37xf32>
    %36 = arith.mulf %35, %26 : vector<16x37xf32>
    %cst_16 = arith.constant dense<0.000000e+00> : vector<16x37xf32>
    %37 = tpu.matmul %15, %36, %cst_16 {dimension_numbers = #tpu.dot_dimension_numbers<[1], [0], [0], [1], [0, 0, 1, 1], [], []>} : vector<16x16xf32>, vector<16x37xf32>, vector<16x37xf32> -> vector<16x37xf32>
    %cst_17 = arith.constant 1.000000e+00 : f32
    %38 = vector.broadcast %cst_17 : f32 to vector<16x1xf32>
    %39 = arith.subf %38, %18 : vector<16x1xf32>
    %40 = vector.broadcast %39 : vector<16x1xf32> to vector<16x37xf32>
    %41 = arith.mulf %40, %36 : vector<16x37xf32>
    %42 = arith.addf %37, %41 : vector<16x37xf32>
    %43 = vector.broadcast %34 : vector<16x1xf32> to vector<16x37xf32>
    %44 = arith.mulf %43, %42 : vector<16x37xf32>
    %45 = arith.addf %44, %4 : vector<16x37xf32>
    %46 = vector.extract_strided_slice %45 {offsets = [0, 0], sizes = [16, 5], strides = [1, 1]} : vector<16x37xf32> to vector<16x5xf32>
    %47 = vector.extract_strided_slice %45 {offsets = [0, 5], sizes = [16, 32], strides = [1, 1]} : vector<16x37xf32> to vector<16x32xf32>
    %cst_18 = arith.constant dense<0xFF800000> : vector<16xf32>
    %48 = vector.multi_reduction <maximumf>, %46, %cst_18 [1] : vector<16x5xf32> to vector<16xf32>
    %cst_19 = arith.constant 0xFF800000 : f32
    %49 = vector.broadcast %cst_19 : f32 to vector<16xf32>
    %50 = arith.maximumf %49, %48 : vector<16xf32>
    %51 = vector.shape_cast %50 : vector<16xf32> to vector<16x1xf32>
    %52 = vector.broadcast %51 : vector<16x1xf32> to vector<16x5xf32>
    %53 = arith.subf %46, %52 : vector<16x5xf32>
    %54 = math.exp %53 : vector<16x5xf32>
    %cst_20 = arith.constant dense<0.000000e+00> : vector<16xf32>
    %55 = vector.multi_reduction <add>, %54, %cst_20 [1] : vector<16x5xf32> to vector<16xf32>
    %56 = vector.shape_cast %55 : vector<16xf32> to vector<16x1xf32>
    %57 = vector.broadcast %56 : vector<16x1xf32> to vector<16x5xf32>
    %58 = arith.divf %54, %57 : vector<16x5xf32>
    %59 = vector.broadcast %25 : vector<16x1xf32> to vector<16x5xf32>
    %60 = arith.mulf %58, %59 : vector<16x5xf32>
    %cst_21 = arith.constant dense<0.000000e+00> : vector<5x32xf32>
    %61 = tpu.matmul %60, %47, %cst_21 {dimension_numbers = #tpu.dot_dimension_numbers<[0], [0], [1], [1], [0, 1, 1, 1], [], []>} : vector<16x5xf32>, vector<16x32xf32>, vector<5x32xf32> -> vector<5x32xf32>
    %cst_22 = arith.constant dense<0.000000e+00> : vector<5x16xf32>
    %62 = tpu.matmul %60, %15, %cst_22 {dimension_numbers = #tpu.dot_dimension_numbers<[0], [0], [1], [1], [0, 1, 1, 1], [], []>} : vector<16x5xf32>, vector<16x16xf32>, vector<5x16xf32> -> vector<5x16xf32>
    %cst_23 = arith.constant dense<0.000000e+00> : vector<5x5xf32>
    %63 = tpu.matmul %62, %60, %cst_23 {dimension_numbers = #tpu.dot_dimension_numbers<[1], [0], [0], [1], [0, 0, 1, 1], [], []>} : vector<5x16xf32>, vector<16x5xf32>, vector<5x5xf32> -> vector<5x5xf32>
    %cst_24 = arith.constant 1.000000e+00 : f32
    %64 = vector.broadcast %cst_24 : f32 to vector<5x5xf32>
    %65 = arith.select %10, %64, %63 : vector<5x5xi1>, vector<5x5xf32>
    %cst_25 = arith.constant dense<0.000000e+00> : vector<5xf32>
    %66 = vector.multi_reduction <add>, %65, %cst_25 [1] : vector<5x5xf32> to vector<5xf32>
    %67 = vector.shape_cast %66 : vector<5xf32> to vector<5x1xf32>
    %cst_26 = arith.constant 1.000000e+00 : f32
    %68 = vector.broadcast %cst_26 : f32 to vector<5x1xf32>
    %69 = arith.maximumf %67, %68 : vector<5x1xf32>
    %70 = math.rsqrt %69 : vector<5x1xf32>
    %cst_27 = arith.constant dense<0.000000e+00> : vector<5x32xf32>
    %71 = tpu.matmul %61, %1, %cst_27 {dimension_numbers = #tpu.dot_dimension_numbers<[1], [0], [0], [1], [0, 0, 1, 1], [], []>} : vector<5x32xf32>, vector<32x32xf32>, vector<5x32xf32> -> vector<5x32xf32>
    %72 = vector.broadcast %70 : vector<5x1xf32> to vector<5x32xf32>
    %73 = arith.mulf %72, %71 : vector<5x32xf32>
    %cst_28 = arith.constant dense<0.000000e+00> : vector<5x32xf32>
    %74 = tpu.matmul %65, %73, %cst_28 {dimension_numbers = #tpu.dot_dimension_numbers<[1], [0], [0], [1], [0, 0, 1, 1], [], []>} : vector<5x5xf32>, vector<5x32xf32>, vector<5x32xf32> -> vector<5x32xf32>
    %75 = vector.broadcast %70 : vector<5x1xf32> to vector<5x32xf32>
    %76 = arith.mulf %75, %74 : vector<5x32xf32>
    %77 = arith.addf %76, %7 : vector<5x32xf32>
    %cst_29 = arith.constant dense<0.000000e+00> : vector<32xf32>
    %78 = vector.multi_reduction <add>, %77, %cst_29 [0] : vector<5x32xf32> to vector<32xf32>
    %79 = vector.shape_cast %78 : vector<32xf32> to vector<1x32xf32>
    %80 = vector.shape_cast %79 : vector<1x32xf32> to vector<1x1x32xf32>
    %c0_30 = arith.constant 0 : index
    %c0_31 = arith.constant 0 : index
    %c0_32 = arith.constant 0 : index
    %81 = vector.load %arg8[%c0_30, %c0_31, %c0_32] : memref<1x1x32xf32, #tpu.memory_space<vmem>>, vector<1x1x32xf32>
    tpu.vector_store %arg8[%c0_30, %c0_31, %c0_32], %80 {strides = array<i32>} : memref<1x1x32xf32, #tpu.memory_space<vmem>>, vector<1x1x32xf32>,
    return
  }
  func.func @transform_0(%arg0: i32, %arg1: memref<2xi32, #tpu.memory_space<smem>>) -> (i32, i32, i32) {
    %c0_i32 = arith.constant 0 : i32
    %c0_i32_0 = arith.constant 0 : i32
    %c0_i32_1 = arith.constant 0 : i32
    return %arg0, %c0_i32, %c0_i32_0 : i32, i32, i32
  }
  func.func @transform_1(%arg0: i32, %arg1: memref<2xi32, #tpu.memory_space<smem>>) -> (i32, i32, i32) {
    %c0_i32 = arith.constant 0 : i32
    %c0_i32_0 = arith.constant 0 : i32
    %c0_i32_1 = arith.constant 0 : i32
    return %arg0, %c0_i32, %c0_i32_0 : i32, i32, i32
  }
  func.func @transform_2(%arg0: i32, %arg1: memref<2xi32, #tpu.memory_space<smem>>) -> (i32, i32) {
    %c0_i32 = arith.constant 0 : i32
    %c0_i32_0 = arith.constant 0 : i32
    %c0_i32_1 = arith.constant 0 : i32
    return %c0_i32, %c0_i32_0 : i32, i32
  }
  func.func @transform_3(%arg0: i32, %arg1: memref<2xi32, #tpu.memory_space<smem>>) -> (i32, i32) {
    %c0_i32 = arith.constant 0 : i32
    %c0_i32_0 = arith.constant 0 : i32
    %c0_i32_1 = arith.constant 0 : i32
    return %c0_i32, %c0_i32_0 : i32, i32
  }
  func.func @transform_4(%arg0: i32, %arg1: memref<2xi32, #tpu.memory_space<smem>>) -> (i32, i32) {
    %c0_i32 = arith.constant 0 : i32
    %c0_i32_0 = arith.constant 0 : i32
    %c0_i32_1 = arith.constant 0 : i32
    return %c0_i32, %c0_i32_0 : i32, i32
  }
  func.func @transform_5(%arg0: i32, %arg1: memref<2xi32, #tpu.memory_space<smem>>) -> (i32, i32) {
    %c0_i32 = arith.constant 0 : i32
    %c0_i32_0 = arith.constant 0 : i32
    %c0_i32_1 = arith.constant 0 : i32
    return %c0_i32, %c0_i32_0 : i32, i32
  }
  func.func @transform_6(%arg0: i32, %arg1: memref<2xi32, #tpu.memory_space<smem>>) -> (i32, i32, i32) {
    %c0_i32 = arith.constant 0 : i32
    %c0_i32_0 = arith.constant 0 : i32
    %c0_i32_1 = arith.constant 0 : i32
    return %arg0, %c0_i32, %c0_i32_0 : i32, i32, i32
  }
}

</mosaic_0001>

<llo_original>
// kernel: tpu_custom_call.1
$region0: #{tpu_custom_call.1}
  #allocation0 [shape = 'u32[]', space=smem, size = 0x4, offset = 0x4, fixed_abs, tag = 'smem constant byte address 0x4 - core index']
  #allocation1 [shape = 'u32[144,128]{1,0:T(1,128)}', space=vmem, size = 0x12000, scoped, tag = 'internal scratch']
  #allocation2 [shape = 's32[1]{0}', space=sflag, size = 0x4, scoped, tag = 'scoped memory for tpu_custom_call.1']
  #allocation3 [shape = 'u8[512]{0}', space=smem, size = 0x200, scoped, tag = 'prefetched SMEM operand 0']
  %s0 = inlined_call_operand.vmem [shape: s32[2], index: 0, kind: input, shape index: {}]
  %s1 = inlined_call_operand.vmem [shape: f32[2,16,5], index: 1, kind: input, shape index: {}]
  %s2 = inlined_call_operand.vmem [shape: bf16[2,16,16], index: 2, kind: input, shape index: {}]
  %s3 = inlined_call_operand.hbm [shape: f32[5,37], index: 3, kind: input, shape index: {}]
  %s4 = inlined_call_operand.vmem [shape: f32[1,37], index: 4, kind: input, shape index: {}]
  %s5 = inlined_call_operand.vmem [shape: f32[32,32], index: 5, kind: input, shape index: {}]
  %s6 = inlined_call_operand.vmem [shape: f32[1,32], index: 6, kind: input, shape index: {}]
  %s7 = inlined_call_operand.hbm [shape: f32[2,1,32], index: 7, kind: output, shape index: {}]
  %s8 = sld [smem:[#allocation0]]
  $region61: #{tpu_custom_call.1} parent=0
    _
  %s10 = ssub.s32 1, %s8
  %s11 = scalar_select 0, %s10, %s8
  %s12 = sshll.u32 %s0, 4
  %s13 = int_to_ptr.vmem [resolvable:$true] %s12
  %15 = dma.vmem_to_smem %s13, 16, [#allocation3], [#allocation2]
  %16 = dma.done [#allocation2], 16
  %17 = sfence
  $region1: #{tpu_custom_call.1} parent=0
    #allocation4 [shape = 'u8[4096]{0}', space=vmem, size = 0x1000, scoped, tag = 'input window, operand 3, single buffered']
    #allocation5 [shape = 's32[2]{0}', space=sflag, size = 0x8, scoped, tag = 'scoped memory for tpu_custom_call.1']
    #allocation6 [shape = 's32[2]{0}', space=sflag, size = 0x8, scoped, tag = 'scoped memory for tpu_custom_call.1']
    #allocation7 [shape = 'u8[1024]{0}', space=vmem, size = 0x400, scoped, tag = 'output window, operand 0']
    %18 = vsyncpa [#allocation5], 0
    %19 = vsyncpa [#allocation6], 0
    %s20 = scalar_lea.sflag [#allocation6], 1
    %21 = vsyncpa %s20, 0
    loop: start=0, step=1, limit=4
    $region2: #{tpu_custom_call.1} parent=1 // loop_pre_header
      _
    $region3: #{tpu_custom_call.1} parent=1 // loop_header
      %s23 = sphi 0, %s27
      %p24 = scmp.ge.s32.totalorder %s23, 4
      %s33 = sphi 0, %s35
      %s36 = sphi 0, %s33
      %s37 = sphi 0, %s36
      %s53 = sphi 0, %s37
      %s59 = sphi 0, %s61
      %s62 = sphi 0, %s59
      %s63 = sphi 0, %s62
      %s79 = sphi 0, %s63
      %s83 = sphi 0, %s83
      %s85 = sphi 0, %s83
      %s86 = sphi 0, %s85
      %s100 = sphi 0, %s86
      %s104 = sphi 0, %s104
      %s106 = sphi 0, %s104
      %s107 = sphi 0, %s106
      %s121 = sphi 0, %s107
      %s125 = sphi 0, %s125
      %s127 = sphi 0, %s125
      %s128 = sphi 0, %s127
      %s142 = sphi 0, %s128
      %s146 = sphi 0, %s146
      %s148 = sphi 0, %s146
      %s149 = sphi 0, %s148
      %s163 = sphi 0, %s149
      %s169 = sphi 0, %s171
      %s172 = sphi 0, %s169
      %s173 = sphi 0, %s172
      %s189 = sphi 0, %s173
    $region4: #{tpu_custom_call.1} parent=1 // loop_header_branch
      %26 = sbr.rel (%p24) target = $region8
    $region5: #{tpu_custom_call.1} parent=1 // loop_body
      %s28 = ssub.s32 %s23, 1
      %s29 = ssub.s32 %s23, 2
      %s30 = sadd.s32 %s23, 1
      %s31 = ssub.s32 %s23, %s30
      %p32 = scmp.eq.s32.totalorder %s31, 0
      %s34 = sadd.s32 %s33, 1
      %s35 = scalar_select %p32, %s33, %s34
      %p38 = pneg %p32
      %p39 = scmp.eq.s32.totalorder %s23, 1
      %p40 = por %p38, %p39
      %p41 = scmp.ne.s32.totalorder %s33, %s36
      %p42 = scmp.eq.s32.totalorder %s23, 0
      %p43 = por %p41, %p42
      %p44 = scmp.ne.s32.totalorder %s33, %s36
      %p45 = scmp.eq.s32.totalorder %s28, 1
      %p46 = por %p44, %p45
      %p47 = scmp.ne.s32.totalorder %s36, %s37
      %p48 = scmp.eq.s32.totalorder %s28, 0
      %p49 = por %p47, %p48
      %p50 = scmp.ne.s32.totalorder %s36, %s37
      %p51 = scmp.eq.s32.totalorder %s29, 1
      %p52 = por %p50, %p51
      %p54 = scmp.ne.s32.totalorder %s37, %s53
      %p55 = scmp.eq.s32.totalorder %s29, 0
      %p56 = por %p54, %p55
      %s57 = ssub.s32 %s23, %s30
      %p58 = scmp.eq.s32.totalorder %s57, 0
      %s60 = sadd.s32 %s59, 1
      %s61 = scalar_select %p58, %s59, %s60
      %p64 = pneg %p58
      %p65 = scmp.eq.s32.totalorder %s23, 1
      %p66 = por %p64, %p65
      %p67 = scmp.ne.s32.totalorder %s59, %s62
      %p68 = scmp.eq.s32.totalorder %s23, 0
      %p69 = por %p67, %p68
      %p70 = scmp.ne.s32.totalorder %s59, %s62
      %p71 = scmp.eq.s32.totalorder %s28, 1
      %p72 = por %p70, %p71
      %p73 = scmp.ne.s32.totalorder %s62, %s63
      %p74 = scmp.eq.s32.totalorder %s28, 0
      %p75 = por %p73, %p74
      %p76 = scmp.ne.s32.totalorder %s62, %s63
      %p77 = scmp.eq.s32.totalorder %s29, 1
      %p78 = por %p76, %p77
      %p80 = scmp.ne.s32.totalorder %s63, %s79
      %p81 = scmp.eq.s32.totalorder %s29, 0
      %p82 = por %p80, %p81
      %s84 = sadd.s32 %s83, 1
      %p87 = scmp.eq.s32.totalorder %s23, 1
      %p88 = scmp.ne.s32.totalorder %s83, %s85
      %p89 = scmp.eq.s32.totalorder %s23, 0
      %p90 = por %p88, %p89
      %p91 = scmp.ne.s32.totalorder %s83, %s85
      %p92 = scmp.eq.s32.totalorder %s28, 1
      %p93 = por %p91, %p92
      %p94 = scmp.ne.s32.totalorder %s85, %s86
      %p95 = scmp.eq.s32.totalorder %s28, 0
      %p96 = por %p94, %p95
      %p97 = scmp.ne.s32.totalorder %s85, %s86
      %p98 = scmp.eq.s32.totalorder %s29, 1
      %p99 = por %p97, %p98
      %p101 = scmp.ne.s32.totalorder %s86, %s100
      %p102 = scmp.eq.s32.totalorder %s29, 0
      %p103 = por %p101, %p102
      %s105 = sadd.s32 %s104, 1
      %p108 = scmp.eq.s32.totalorder %s23, 1
      %p109 = scmp.ne.s32.totalorder %s104, %s106
      %p110 = scmp.eq.s32.totalorder %s23, 0
      %p111 = por %p109, %p110
      %p112 = scmp.ne.s32.totalorder %s104, %s106
      %p113 = scmp.eq.s32.totalorder %s28, 1
      %p114 = por %p112, %p113
      %p115 = scmp.ne.s32.totalorder %s106, %s107
      %p116 = scmp.eq.s32.totalorder %s28, 0
      %p117 = por %p115, %p116
      %p118 = scmp.ne.s32.totalorder %s106, %s107
      %p119 = scmp.eq.s32.totalorder %s29, 1
      %p120 = por %p118, %p119
      %p122 = scmp.ne.s32.totalorder %s107, %s121
      %p123 = scmp.eq.s32.totalorder %s29, 0
      %p124 = por %p122, %p123
      %s126 = sadd.s32 %s125, 1
      %p129 = scmp.eq.s32.totalorder %s23, 1
      %p130 = scmp.ne.s32.totalorder %s125, %s127
      %p131 = scmp.eq.s32.totalorder %s23, 0
      %p132 = por %p130, %p131
      %p133 = scmp.ne.s32.totalorder %s125, %s127
      %p134 = scmp.eq.s32.totalorder %s28, 1
      %p135 = por %p133, %p134
      %p136 = scmp.ne.s32.totalorder %s127, %s128
      %p137 = scmp.eq.s32.totalorder %s28, 0
      %p138 = por %p136, %p137
      %p139 = scmp.ne.s32.totalorder %s127, %s128
      %p140 = scmp.eq.s32.totalorder %s29, 1
      %p141 = por %p139, %p140
      %p143 = scmp.ne.s32.totalorder %s128, %s142
      %p144 = scmp.eq.s32.totalorder %s29, 0
      %p145 = por %p143, %p144
      %s147 = sadd.s32 %s146, 1
      %p150 = scmp.eq.s32.totalorder %s23, 1
      %p151 = scmp.ne.s32.totalorder %s146, %s148
      %p152 = scmp.eq.s32.totalorder %s23, 0
      %p153 = por %p151, %p152
      %p154 = scmp.ne.s32.totalorder %s146, %s148
      %p155 = scmp.eq.s32.totalorder %s28, 1
      %p156 = por %p154, %p155
      %p157 = scmp.ne.s32.totalorder %s148, %s149
      %p158 = scmp.eq.s32.totalorder %s28, 0
      %p159 = por %p157, %p158
      %p160 = scmp.ne.s32.totalorder %s148, %s149
      %p161 = scmp.eq.s32.totalorder %s29, 1
      %p162 = por %p160, %p161
      %p164 = scmp.ne.s32.totalorder %s149, %s163
      %p165 = scmp.eq.s32.totalorder %s29, 0
      %p166 = por %p164, %p165
      %s167 = ssub.s32 %s23, %s30
      %p168 = scmp.eq.s32.totalorder %s167, 0
      %s170 = sadd.s32 %s169, 1
      %s171 = scalar_select %p168, %s169, %s170
      %p174 = pneg %p168
      %p175 = scmp.eq.s32.totalorder %s23, 1
      %p176 = por %p174, %p175
      %p177 = scmp.ne.s32.totalorder %s169, %s172
      %p178 = scmp.eq.s32.totalorder %s23, 0
      %p179 = por %p177, %p178
      %p180 = scmp.ne.s32.totalorder %s169, %s172
      %p181 = scmp.eq.s32.totalorder %s28, 1
      %p182 = por %p180, %p181
      %p183 = scmp.ne.s32.totalorder %s172, %s173
      %p184 = scmp.eq.s32.totalorder %s28, 0
      %p185 = por %p183, %p184
      %p186 = scmp.ne.s32.totalorder %s172, %s173
      %p187 = scmp.eq.s32.totalorder %s29, 1
      %p188 = por %p186, %p187
      %p190 = scmp.ne.s32.totalorder %s173, %s189
      %p191 = scmp.eq.s32.totalorder %s29, 0
      %p192 = por %p190, %p191
      %p193 = scmp.le.s32.totalorder 1, %s23
      %p194 = scmp.lt.s32.totalorder %s23, 3
      %p195 = pnand %p193, %p194
      %p196 = pneg %p195
      // Predicated region
      $region9: #{tpu_custom_call.1} parent=5 // pred_check
        _
      $region10: #{tpu_custom_call.1} parent=5 // pred_check_branch
        %198 = sbr.rel (%p195) target = $region12
      $region11: #{tpu_custom_call.1} parent=5 // pred_region
        %s199 = ssub.s32 %s23, 1
        // Predicated region
        $region13: #{tpu_custom_call.1} parent=11 // pred_check
          %p200 = pneg %p96
        $region14: #{tpu_custom_call.1} parent=11 // pred_check_branch
          %202 = sbr.rel (%p200) target = $region16
        $region15: #{tpu_custom_call.1} parent=11 // pred_region
          %s204 = ssub.s32 128, 128
          %205 = vsyncadd [#allocation5], %s204
          %s207 = sshll.u32 [#allocation4], 4
          %s208 = int_to_ptr.vmem [resolvable:$true] %s207
          %210 = dma.hbm_to_vmem [thread:$0]  %s3, 128, %s208, [#allocation5]
        $region16: #{tpu_custom_call.1} parent=11 // pred_fallthru
          _
        // Predicated region
        $region17: #{tpu_custom_call.1} parent=11 // pred_check
          %p211 = pneg %p117
        $region18: #{tpu_custom_call.1} parent=11 // pred_check_branch
          %213 = sbr.rel (%p211) target = $region20
        $region19: #{tpu_custom_call.1} parent=11 // pred_region
          _
        $region20: #{tpu_custom_call.1} parent=11 // pred_fallthru
          _
        // Predicated region
        $region21: #{tpu_custom_call.1} parent=11 // pred_check
          %p214 = pneg %p138
        $region22: #{tpu_custom_call.1} parent=11 // pred_check_branch
          %216 = sbr.rel (%p214) target = $region24
        $region23: #{tpu_custom_call.1} parent=11 // pred_region
          _
        $region24: #{tpu_custom_call.1} parent=11 // pred_fallthru
          _
        // Predicated region
        $region25: #{tpu_custom_call.1} parent=11 // pred_check
          %p217 = pneg %p159
        $region26: #{tpu_custom_call.1} parent=11 // pred_check_branch
          %219 = sbr.rel (%p217) target = $region28
        $region27: #{tpu_custom_call.1} parent=11 // pred_region
          _
        $region28: #{tpu_custom_call.1} parent=11 // pred_fallthru
          _
      $region12: #{tpu_custom_call.1} parent=5 // pred_fallthru
        _
      %p220 = scmp.lt.s32.totalorder %s23, 2
      // Predicated region
      $region29: #{tpu_custom_call.1} parent=5 // pred_check
        %p221 = pneg %p220
      $region30: #{tpu_custom_call.1} parent=5 // pred_check_branch
        %223 = sbr.rel (%p221) target = $region32
      $region31: #{tpu_custom_call.1} parent=5 // pred_region
        // Predicated region
        $region33: #{tpu_custom_call.1} parent=31 // pred_check
          %p224 = pneg %p43
        $region34: #{tpu_custom_call.1} parent=31 // pred_check_branch
          %226 = sbr.rel (%p224) target = $region36
        $region35: #{tpu_custom_call.1} parent=31 // pred_region
          %p227 = scmp.lt.s32.totalorder %s23, 1
          %s228 = scalar_select %p227, %s23, 1
          %s229 = smul.addr %s228, 2
          %s230 = smul.addr %s229, 8
          %s231 = scalar_lea.vmem %s1, %s230
        $region36: #{tpu_custom_call.1} parent=31 // pred_fallthru
          _
        // Predicated region
        $region37: #{tpu_custom_call.1} parent=31 // pred_check
          %p232 = pneg %p69
        $region38: #{tpu_custom_call.1} parent=31 // pred_check_branch
          %234 = sbr.rel (%p232) target = $region40
        $region39: #{tpu_custom_call.1} parent=31 // pred_region
          %p235 = scmp.lt.s32.totalorder %s23, 1
          %s236 = scalar_select %p235, %s23, 1
          %s237 = smul.addr %s236, 2
          %s238 = smul.addr %s237, 4
          %s239 = scalar_lea.vmem %s2, %s238
        $region40: #{tpu_custom_call.1} parent=31 // pred_fallthru
          _
      $region32: #{tpu_custom_call.1} parent=5 // pred_fallthru
        _
      %p240 = scmp.le.s32.totalorder 1, %s23
      %p241 = scmp.lt.s32.totalorder %s23, 3
      %p242 = pnand %p240, %p241
      %p243 = pneg %p242
      // Predicated region
      $region41: #{tpu_custom_call.1} parent=5 // pred_check
        _
      $region42: #{tpu_custom_call.1} parent=5 // pred_check_branch
        %245 = sbr.rel (%p242) target = $region44
      $region43: #{tpu_custom_call.1} parent=5 // pred_region
        %s246 = ssub.s32 %s23, 1
        // Predicated region
        $region45: #{tpu_custom_call.1} parent=43 // pred_check
          %p247 = pneg %p96
        $region46: #{tpu_custom_call.1} parent=43 // pred_check_branch
          %249 = sbr.rel (%p247) target = $region48
        $region47: #{tpu_custom_call.1} parent=43 // pred_region
          %250 = dma.done [#allocation5], 128
        $region48: #{tpu_custom_call.1} parent=43 // pred_fallthru
          _
        %p251 = scmp.lt.s32.totalorder %s28, 1
        %s252 = scalar_select %p251, %s28, 1
        %s253 = smul.addr %s252, 2
        %s254 = smul.addr %s253, 8
        %s255 = scalar_lea.vmem %s1, %s254
        %p256 = pneg %p49
        %p257 = pneg %p46
        %p258 = scmp.lt.s32.totalorder %s28, 1
        %s259 = scalar_select %p258, %s28, 1
        %s260 = smul.addr %s259, 2
        %s261 = smul.addr %s260, 4
        %s262 = scalar_lea.vmem %s2, %s261
        %p263 = pneg %p75
        %p264 = pneg %p72
        %p265 = pneg %p96
        %p266 = pneg %p93
        %p267 = pneg %p117
        %p268 = pneg %p114
        %p269 = pneg %p138
        %p270 = pneg %p135
        %p271 = pneg %p159
        %p272 = pneg %p156
        %p273 = pneg %p185
        %p274 = pneg %p182
        %s275 = sand.u32 %s172, 1
        %s276 = scalar_lea.sflag [#allocation6], %s275
        %s277 = sand.u32 %s172, 1
        %s278 = scalar_lea.vmem [#allocation7], %s277
        %p279 = scmp.lt.s32.totalorder %s28, 1
        %s280 = scalar_select %p279, %s28, 1
        %s281 = smul.addr %s280, 2
        %s282 = smul.addr %s281, 8
        %s283 = scalar_lea.vmem %s1, %s282
        %p284 = scmp.lt.s32.totalorder %s28, 1
        %s285 = scalar_select %p284, %s28, 1
        %s286 = smul.addr %s285, 2
        %s287 = smul.addr %s286, 4
        %s288 = scalar_lea.vmem %s2, %s287
        %v289 = vld [vmem:[#allocation4] sm:$0x1f]
        %v290 = vld [vmem:[%s5] sm:$0xff]
        %v291 = vld [vmem:[%s5 + $0x8] sm:$0xff]
        %v292 = vld [vmem:[%s5 + $0x10] sm:$0xff]
        %v293 = vld [vmem:[%s5 + $0x18] sm:$0xff]
        %v294 = vld [vmem:[%s4] sm:$0x1]
        %v296 = vlaneseq
        %v297 = vshrl.u32 %v296, 7
        %v298 = vsub.s32 0, %v297
        %v299 = vrot.slane %v294, %v298
        %v301 = vld [vmem:[%s6] sm:$0x1]
        %v303 = vlaneseq
        %v304 = vshrl.u32 %v303, 7
        %v305 = vsub.s32 0, %v304
        %v306 = vrot.slane %v301, %v305
        %v308 = vlaneseq
        %v309 = vshrl.u32 %v308, 7
        %v310 = vlaneseq
        %v311 = vand.u32 %v310, 127
        %vm312 = vcmp.eq.s32.totalorder %v309, %v311
        %v313 = vadd.s32 %v309, 8
        %v314 = vld [vmem:[%s288] sm:$0xf]
        %v315 = vld [vmem:[%s288 + $0x4] sm:$0xf]
        %v316 = vunpack.c.l.bf16 %v314
        %v317 = vunpack.c.l.bf16 %v315
        %v318 = vld [vmem:[%s283] sm:$0xff]
        %v319 = vld [vmem:[%s283 + $0x8] sm:$0xff]
        %s320 = sld [smem:[#allocation3 + %s28]]
        %v321 = vstv %s320
        %vm322 = vcmp.lt.s32.totalorder %v309, %v321
        %vm323 = vcmp.lt.s32.totalorder %v313, %v321
        %v324 = vsel %vm322, 1, 0
        %v325 = vsel %vm323, 1, 0
        %v326 = vcvt.s32.f32 %v324
        %v327 = vcvt.s32.f32 %v325
        %vm328 = vcmask 39936
        %v330 = vsel %vm328, %v318, 0
        %v333 = vsel %vm328, %v319, 0
        %vm335 = vcmask 1044480
        %v337 = vsel %vm335, %v289, 0
        %339 = vmatprep.subr.mxu0 0.0
        %340 = vmatpush1.msra.mxu0 0.0
        %341 = vmatprep.subr.mxu0 0.0
        %342 = vmatpush1.msra.mxu0 0.0
        %343 = vmatprep.subr.mxu0 0.0
        %344 = vmatpush1.msra.mxu0 0.0
        %345 = vmatprep.subr.mxu0 0.0
        %346 = vmatpush1.msra.mxu0 0.0
        %347 = vmatprep.subr.mxu0 0.0
        %348 = vmatpush1.msra.mxu0 0.0
        %349 = vmatprep.subr.mxu0 0.0
        %350 = vmatpush1.msra.mxu0 0.0
        %351 = vmatprep.subr.mxu0 0.0
        %352 = vmatpush1.msra.mxu0 0.0
        %353 = vmatprep.subr.mxu0 0.0
        %354 = vmatpush1.msra.mxu0 0.0
        %355 = vmatprep.subr.mxu0 0.0
        %356 = vmatpush1.msra.mxu0 0.0
        %357 = vmatprep.subr.mxu0 0.0
        %358 = vmatpush1.msra.mxu0 0.0
        %359 = vmatprep.subr.mxu0 0.0
        %360 = vmatpush1.msra.mxu0 0.0
        %361 = vmatprep.subr.mxu0 0.0
        %362 = vmatpush1.msra.mxu0 0.0
        %363 = vmatprep.subr.mxu0 0.0
        %364 = vmatpush1.msra.mxu0 0.0
        %365 = vmatprep.subr.mxu0 0.0
        %366 = vmatpush1.msra.mxu0 0.0
        %367 = vmatprep.subr.mxu0 0.0
        %368 = vmatpush1.msra.mxu0 0.0
        %369 = vmatprep.subr.mxu0 0.0
        %370 = vmatpush1.msra.mxu0 %v337
        %371 = vmatprep.subr.mxu0 0.0
        %372 = vmatpush2.msra.mxu0 0.0
        %373 = vmatprep.subr.mxu0 0.0
        %374 = vmatpush2.msra.mxu0 0.0
        %375 = vmatprep.subr.mxu0 0.0
        %376 = vmatpush2.msra.mxu0 0.0
        %377 = vmatprep.subr.mxu0 0.0
        %378 = vmatpush2.msra.mxu0 0.0
        %379 = vmatprep.subr.mxu0 0.0
        %380 = vmatpush2.msra.mxu0 0.0
        %381 = vmatprep.subr.mxu0 0.0
        %382 = vmatpush2.msra.mxu0 0.0
        %383 = vmatprep.subr.mxu0 0.0
        %384 = vmatpush2.msra.mxu0 0.0
        %385 = vmatprep.subr.mxu0 0.0
        %386 = vmatpush2.msra.mxu0 0.0
        %387 = vmatprep.subr.mxu0 0.0
        %388 = vmatpush2.msra.mxu0 0.0
        %389 = vmatprep.subr.mxu0 0.0
        %390 = vmatpush2.msra.mxu0 0.0
        %391 = vmatprep.subr.mxu0 0.0
        %392 = vmatpush2.msra.mxu0 0.0
        %393 = vmatprep.subr.mxu0 0.0
        %394 = vmatpush2.msra.mxu0 0.0
        %395 = vmatprep.subr.mxu0 0.0
        %396 = vmatpush2.msra.mxu0 0.0
        %397 = vmatprep.subr.mxu0 0.0
        %398 = vmatpush2.msra.mxu0 0.0
        %399 = vmatprep.subr.mxu0 0.0
        %400 = vmatpush2.msra.mxu0 0.0
        %401 = vmatprep.subr.mxu0 0.0
        %402 = vmatpush2.msra.mxu0 0.0
        %403 = vmatprep.mubr.f32.mxu0 0.0
        %404 = vmatmul.mubr.f32.gmra.mxu0 %v330
        %v405 = vpop.f32.mrf.mxu0
        %v406 = vadd.f32 0.0, %v405
        %v407 = vpop.f32.mrf.mxu0
        %408 = vmatprep.mubr.f32.mxu0 0.0
        %409 = vmatmul.mubr.f32.gmra.mxu0 %v333
        %v410 = vpop.f32.mrf.mxu0
        %v411 = vadd.f32 0.0, %v410
        %v412 = vpop.f32.mrf.mxu0
        %413 = vdwg.mxu0
        %vm414 = vcmask 130048
        %v415 = vsel %vm414, %v316, 0.0
        %416 = vadd.xlane.f32.xlu0 %v415
        %v417 = vpop.xlane.xlu0 %416
        %v418 = vsel %vm414, %v317, 0.0
        %419 = vadd.xlane.f32.xlu0 %v418
        %v420 = vpop.xlane.xlu0 %419
        %v421 = vsub.f32 %v417, %v318
        %v422 = vsub.f32 %v420, %v319
        %v423 = vadd.f32 %v421, 1.0
        %v424 = vadd.f32 %v422, 1.0
        %v425 = vmax.f32 %v423, 1.0
        %v426 = vmax.f32 %v424, 1.0
        %v427 = vrsqrt.pop %v425
        %v428 = vrsqrt.pop %v426
        %430 = vset.pattern.permute.xlu0 4
        %431 = vperm.xlu0 %430, %v427
        %v432 = vpop.permute.xlu0 %431
        %435 = vset.pattern.permute.xlu0 4
        %436 = vperm.xlu0 %435, %v428
        %v437 = vpop.permute.xlu0 %436
        %v439 = vmul.f32 %v432, %v406
        %v440 = vmul.f32 %v437, %v411
        %v441 = vsub.f32 1.0, %v318
        %v442 = vsub.f32 1.0, %v319
        %444 = vset.pattern.permute.xlu0 4
        %445 = vperm.xlu0 %444, %v441
        %v446 = vpop.permute.xlu0 %445
        %449 = vset.pattern.permute.xlu0 4
        %450 = vperm.xlu0 %449, %v442
        %v451 = vpop.permute.xlu0 %450
        %v453 = vmul.f32 %v446, %v439
        %v454 = vmul.f32 %v451, %v440
        %v456 = vsel %vm414, %v316, 0
        %v459 = vsel %vm414, %v317, 0
        %461 = vmatprep.subr.mxu0 0.0
        %462 = vmatpush1.msra.mxu0 0.0
        %463 = vmatprep.subr.mxu0 0.0
        %464 = vmatpush1.msra.mxu0 0.0
        %465 = vmatprep.subr.mxu0 0.0
        %466 = vmatpush1.msra.mxu0 0.0
        %467 = vmatprep.subr.mxu0 0.0
        %468 = vmatpush1.msra.mxu0 0.0
        %469 = vmatprep.subr.mxu0 0.0
        %470 = vmatpush1.msra.mxu0 0.0
        %471 = vmatprep.subr.mxu0 0.0
        %472 = vmatpush1.msra.mxu0 0.0
        %473 = vmatprep.subr.mxu0 0.0
        %474 = vmatpush1.msra.mxu0 0.0
        %475 = vmatprep.subr.mxu0 0.0
        %476 = vmatpush1.msra.mxu0 0.0
        %477 = vmatprep.subr.mxu0 0.0
        %478 = vmatpush1.msra.mxu0 0.0
        %479 = vmatprep.subr.mxu0 0.0
        %480 = vmatpush1.msra.mxu0 0.0
        %481 = vmatprep.subr.mxu0 0.0
        %482 = vmatpush1.msra.mxu0 0.0
        %483 = vmatprep.subr.mxu0 0.0
        %484 = vmatpush1.msra.mxu0 0.0
        %485 = vmatprep.subr.mxu0 0.0
        %486 = vmatpush1.msra.mxu0 0.0
        %487 = vmatprep.subr.mxu0 0.0
        %488 = vmatpush1.msra.mxu0 0.0
        %489 = vmatprep.subr.mxu0 0.0
        %490 = vmatpush1.msra.mxu0 %v440
        %491 = vmatprep.subr.mxu0 0.0
        %492 = vmatpush1.msra.mxu0 %v439
        %493 = vmatprep.subr.mxu0 0.0
        %494 = vmatpush2.msra.mxu0 0.0
        %495 = vmatprep.subr.mxu0 0.0
        %496 = vmatpush2.msra.mxu0 0.0
        %497 = vmatprep.subr.mxu0 0.0
        %498 = vmatpush2.msra.mxu0 0.0
        %499 = vmatprep.subr.mxu0 0.0
        %500 = vmatpush2.msra.mxu0 0.0
        %501 = vmatprep.subr.mxu0 0.0
        %502 = vmatpush2.msra.mxu0 0.0
        %503 = vmatprep.subr.mxu0 0.0
        %504 = vmatpush2.msra.mxu0 0.0
        %505 = vmatprep.subr.mxu0 0.0
        %506 = vmatpush2.msra.mxu0 0.0
        %507 = vmatprep.subr.mxu0 0.0
        %508 = vmatpush2.msra.mxu0 0.0
        %509 = vmatprep.subr.mxu0 0.0
        %510 = vmatpush2.msra.mxu0 0.0
        %511 = vmatprep.subr.mxu0 0.0
        %512 = vmatpush2.msra.mxu0 0.0
        %513 = vmatprep.subr.mxu0 0.0
        %514 = vmatpush2.msra.mxu0 0.0
        %515 = vmatprep.subr.mxu0 0.0
        %516 = vmatpush2.msra.mxu0 0.0
        %517 = vmatprep.subr.mxu0 0.0
        %518 = vmatpush2.msra.mxu0 0.0
        %519 = vmatprep.subr.mxu0 0.0
        %520 = vmatpush2.msra.mxu0 0.0
        %521 = vmatprep.subr.mxu0 0.0
        %522 = vmatpush2.msra.mxu0 0.0
        %523 = vmatprep.subr.mxu0 0.0
        %524 = vmatpush2.msra.mxu0 0.0
        %525 = vmatprep.mubr.f32.mxu0 0.0
        %526 = vmatmul.mubr.f32.gmra.mxu0 %v456
        %v527 = vpop.f32.mrf.mxu0
        %v528 = vadd.f32 %v453, %v527
        %v529 = vpop.f32.mrf.mxu0
        %530 = vmatprep.mubr.f32.mxu0 0.0
        %531 = vmatmul.mubr.f32.gmra.mxu0 %v459
        %v532 = vpop.f32.mrf.mxu0
        %v533 = vadd.f32 %v454, %v532
        %v534 = vpop.f32.mrf.mxu0
        %535 = vdwg.mxu0
        %v536 = vmul.f32 %v432, %v528
        %v537 = vmul.f32 %v437, %v533
        %v538 = vadd.f32 %v536, %v299
        %v539 = vadd.f32 %v537, %v299
        %v540 = vsel %vm328, %v538, -inf
        %541 = vmax.xlane.f32.xlu0 %v540
        %v542 = vpop.xlane.xlu0 %541
        %v543 = vsel %vm328, %v539, -inf
        %544 = vmax.xlane.f32.xlu0 %v543
        %v545 = vpop.xlane.xlu0 %544
        %v546 = vsub.f32 %v538, %v542
        %v547 = vsub.f32 %v539, %v545
        %v548 = vmul.f32 %v546, 1.442695
        %v549 = vpow.pop %v548
        %v550 = vmul.f32 %v547, 1.442695
        %v551 = vpow.pop %v550
        %v552 = vsel %vm328, %v549, 0.0
        %553 = vadd.xlane.f32.xlu0 %v552
        %v554 = vpop.xlane.xlu0 %553
        %v555 = vsel %vm328, %v551, 0.0
        %556 = vadd.xlane.f32.xlu0 %v555
        %v557 = vpop.xlane.xlu0 %556
        %v558 = vrcp.pop %v554
        %v559 = vmul.f32 %v549, %v558
        %v560 = vrcp.pop %v557
        %v561 = vmul.f32 %v551, %v560
        %v562 = vmul.f32 %v559, %v326
        %v563 = vmul.f32 %v561, %v327
        %564 = vxpose.xlu0.b32.start [1/16] %v562, 128
        %565 = vxpose.xlu0.b32.cont [2/16] %v563, 128
        %566 = vxpose.xlu0.b32.cont [3/16] 0.0, 128
        %567 = vxpose.xlu0.b32.cont [4/16] 0.0, 128
        %568 = vxpose.xlu0.b32.cont [5/16] 0.0, 128
        %569 = vxpose.xlu0.b32.cont [6/16] 0.0, 128
        %570 = vxpose.xlu0.b32.cont [7/16] 0.0, 128
        %571 = vxpose.xlu0.b32.cont [8/16] 0.0, 128
        %572 = vxpose.xlu0.b32.cont [9/16] 0.0, 128
        %573 = vxpose.xlu0.b32.cont [10/16] 0.0, 128
        %574 = vxpose.xlu0.b32.cont [11/16] 0.0, 128
        %575 = vxpose.xlu0.b32.cont [12/16] 0.0, 128
        %576 = vxpose.xlu0.b32.cont [13/16] 0.0, 128
        %577 = vxpose.xlu0.b32.cont [14/16] 0.0, 128
        %578 = vxpose.xlu0.b32.cont [15/16] 0.0, 128
        %579 = vxpose.xlu0.b32.end [16/16] 0.0, 128
        %v580 = vpop.trf.xlu0
        %v581 = vpop.trf.xlu0
        %v582 = vpop.trf.xlu0
        %v583 = vpop.trf.xlu0
        %v584 = vpop.trf.xlu0
        %v585 = vpop.trf.xlu0
        %v586 = vpop.trf.xlu0
        %v587 = vpop.trf.xlu0
        %v588 = vpop.trf.xlu0
        %v589 = vpop.trf.xlu0
        %v590 = vpop.trf.xlu0
        %v591 = vpop.trf.xlu0
        %v592 = vpop.trf.xlu0
        %v593 = vpop.trf.xlu0
        %v594 = vpop.trf.xlu0
        %v595 = vpop.trf.xlu0
        %598 = vrot.lane.b32.xlu0 %v538, 123
        %v599 = vpop.permute.xlu0 %598
        %600 = vrot.lane.b32.xlu0 %v539, 123
        %v601 = vpop.permute.xlu0 %600
        %v605 = vsel %vm414, %v580, 0
        %607 = vmatprep.subr.mxu0 0.0
        %608 = vmatpush1.msra.mxu0 0.0
        %609 = vmatprep.subr.mxu0 0.0
        %610 = vmatpush1.msra.mxu0 0.0
        %611 = vmatprep.subr.mxu0 0.0
        %612 = vmatpush1.msra.mxu0 0.0
        %613 = vmatprep.subr.mxu0 0.0
        %614 = vmatpush1.msra.mxu0 0.0
        %615 = vmatprep.subr.mxu0 0.0
        %616 = vmatpush1.msra.mxu0 0.0
        %617 = vmatprep.subr.mxu0 0.0
        %618 = vmatpush1.msra.mxu0 0.0
        %619 = vmatprep.subr.mxu0 0.0
        %620 = vmatpush1.msra.mxu0 0.0
        %621 = vmatprep.subr.mxu0 0.0
        %622 = vmatpush1.msra.mxu0 0.0
        %623 = vmatprep.subr.mxu0 0.0
        %624 = vmatpush1.msra.mxu0 0.0
        %625 = vmatprep.subr.mxu0 0.0
        %626 = vmatpush1.msra.mxu0 0.0
        %627 = vmatprep.subr.mxu0 0.0
        %628 = vmatpush1.msra.mxu0 0.0
        %629 = vmatprep.subr.mxu0 0.0
        %630 = vmatpush1.msra.mxu0 0.0
        %631 = vmatprep.subr.mxu0 0.0
        %632 = vmatpush1.msra.mxu0 0.0
        %633 = vmatprep.subr.mxu0 0.0
        %634 = vmatpush1.msra.mxu0 0.0
        %635 = vmatprep.subr.mxu0 0.0
        %636 = vmatpush1.msra.mxu0 %v601
        %637 = vmatprep.subr.mxu0 0.0
        %638 = vmatpush1.msra.mxu0 %v599
        %639 = vmatprep.subr.mxu0 0.0
        %640 = vmatpush2.msra.mxu0 0.0
        %641 = vmatprep.subr.mxu0 0.0
        %642 = vmatpush2.msra.mxu0 0.0
        %643 = vmatprep.subr.mxu0 0.0
        %644 = vmatpush2.msra.mxu0 0.0
        %645 = vmatprep.subr.mxu0 0.0
        %646 = vmatpush2.msra.mxu0 0.0
        %647 = vmatprep.subr.mxu0 0.0
        %648 = vmatpush2.msra.mxu0 0.0
        %649 = vmatprep.subr.mxu0 0.0
        %650 = vmatpush2.msra.mxu0 0.0
        %651 = vmatprep.subr.mxu0 0.0
        %652 = vmatpush2.msra.mxu0 0.0
        %653 = vmatprep.subr.mxu0 0.0
        %654 = vmatpush2.msra.mxu0 0.0
        %655 = vmatprep.subr.mxu0 0.0
        %656 = vmatpush2.msra.mxu0 0.0
        %657 = vmatprep.subr.mxu0 0.0
        %658 = vmatpush2.msra.mxu0 0.0
        %659 = vmatprep.subr.mxu0 0.0
        %660 = vmatpush2.msra.mxu0 0.0
        %661 = vmatprep.subr.mxu0 0.0
        %662 = vmatpush2.msra.mxu0 0.0
        %663 = vmatprep.subr.mxu0 0.0
        %664 = vmatpush2.msra.mxu0 0.0
        %665 = vmatprep.subr.mxu0 0.0
        %666 = vmatpush2.msra.mxu0 0.0
        %667 = vmatprep.subr.mxu0 0.0
        %668 = vmatpush2.msra.mxu0 0.0
        %669 = vmatprep.subr.mxu0 0.0
        %670 = vmatpush2.msra.mxu0 0.0
        %671 = vmatprep.mubr.f32.mxu0 0.0
        %672 = vmatmul.mubr.f32.gmra.mxu0 %v605
        %v673 = vpop.f32.mrf.mxu0
        %v674 = vadd.f32 0.0, %v673
        %v675 = vpop.f32.mrf.mxu0
        %676 = vdwg.mxu0
        %677 = vmatprep.subr.mxu0 0.0
        %678 = vmatpush1.msra.mxu0 0.0
        %679 = vmatprep.subr.mxu0 0.0
        %680 = vmatpush1.msra.mxu0 0.0
        %681 = vmatprep.subr.mxu0 0.0
        %682 = vmatpush1.msra.mxu0 0.0
        %683 = vmatprep.subr.mxu0 0.0
        %684 = vmatpush1.msra.mxu0 0.0
        %685 = vmatprep.subr.mxu0 0.0
        %686 = vmatpush1.msra.mxu0 0.0
        %687 = vmatprep.subr.mxu0 0.0
        %688 = vmatpush1.msra.mxu0 0.0
        %689 = vmatprep.subr.mxu0 0.0
        %690 = vmatpush1.msra.mxu0 0.0
        %691 = vmatprep.subr.mxu0 0.0
        %692 = vmatpush1.msra.mxu0 0.0
        %693 = vmatprep.subr.mxu0 0.0
        %694 = vmatpush1.msra.mxu0 0.0
        %695 = vmatprep.subr.mxu0 0.0
        %696 = vmatpush1.msra.mxu0 0.0
        %697 = vmatprep.subr.mxu0 0.0
        %698 = vmatpush1.msra.mxu0 0.0
        %699 = vmatprep.subr.mxu0 0.0
        %700 = vmatpush1.msra.mxu0 0.0
        %701 = vmatprep.subr.mxu0 0.0
        %702 = vmatpush1.msra.mxu0 0.0
        %703 = vmatprep.subr.mxu0 0.0
        %704 = vmatpush1.msra.mxu0 0.0
        %705 = vmatprep.subr.mxu0 0.0
        %706 = vmatpush1.msra.mxu0 %v317
        %707 = vmatprep.subr.mxu0 0.0
        %708 = vmatpush1.msra.mxu0 %v316
        %709 = vmatprep.subr.mxu0 0.0
        %710 = vmatpush2.msra.mxu0 0.0
        %711 = vmatprep.subr.mxu0 0.0
        %712 = vmatpush2.msra.mxu0 0.0
        %713 = vmatprep.subr.mxu0 0.0
        %714 = vmatpush2.msra.mxu0 0.0
        %715 = vmatprep.subr.mxu0 0.0
        %716 = vmatpush2.msra.mxu0 0.0
        %717 = vmatprep.subr.mxu0 0.0
        %718 = vmatpush2.msra.mxu0 0.0
        %719 = vmatprep.subr.mxu0 0.0
        %720 = vmatpush2.msra.mxu0 0.0
        %721 = vmatprep.subr.mxu0 0.0
        %722 = vmatpush2.msra.mxu0 0.0
        %723 = vmatprep.subr.mxu0 0.0
        %724 = vmatpush2.msra.mxu0 0.0
        %725 = vmatprep.subr.mxu0 0.0
        %726 = vmatpush2.msra.mxu0 0.0
        %727 = vmatprep.subr.mxu0 0.0
        %728 = vmatpush2.msra.mxu0 0.0
        %729 = vmatprep.subr.mxu0 0.0
        %730 = vmatpush2.msra.mxu0 0.0
        %731 = vmatprep.subr.mxu0 0.0
        %732 = vmatpush2.msra.mxu0 0.0
        %733 = vmatprep.subr.mxu0 0.0
        %734 = vmatpush2.msra.mxu0 0.0
        %735 = vmatprep.subr.mxu0 0.0
        %736 = vmatpush2.msra.mxu0 0.0
        %737 = vmatprep.subr.mxu0 0.0
        %738 = vmatpush2.msra.mxu0 0.0
        %739 = vmatprep.subr.mxu0 0.0
        %740 = vmatpush2.msra.mxu0 0.0
        %741 = vmatprep.mubr.f32.mxu0 0.0
        %742 = vmatmul.mubr.f32.gmra.mxu0 %v605
        %v743 = vpop.f32.mrf.mxu0
        %v744 = vadd.f32 0.0, %v743
        %v745 = vpop.f32.mrf.mxu0
        %746 = vdwg.mxu0
        %v748 = vsel %vm414, %v744, 0
        %750 = vmatprep.subr.mxu0 0.0
        %751 = vmatpush1.msra.mxu0 0.0
        %752 = vmatprep.subr.mxu0 0.0
        %753 = vmatpush1.msra.mxu0 0.0
        %754 = vmatprep.subr.mxu0 0.0
        %755 = vmatpush1.msra.mxu0 0.0
        %756 = vmatprep.subr.mxu0 0.0
        %757 = vmatpush1.msra.mxu0 0.0
        %758 = vmatprep.subr.mxu0 0.0
        %759 = vmatpush1.msra.mxu0 0.0
        %760 = vmatprep.subr.mxu0 0.0
        %761 = vmatpush1.msra.mxu0 0.0
        %762 = vmatprep.subr.mxu0 0.0
        %763 = vmatpush1.msra.mxu0 0.0
        %764 = vmatprep.subr.mxu0 0.0
        %765 = vmatpush1.msra.mxu0 0.0
        %766 = vmatprep.subr.mxu0 0.0
        %767 = vmatpush1.msra.mxu0 0.0
        %768 = vmatprep.subr.mxu0 0.0
        %769 = vmatpush1.msra.mxu0 0.0
        %770 = vmatprep.subr.mxu0 0.0
        %771 = vmatpush1.msra.mxu0 0.0
        %772 = vmatprep.subr.mxu0 0.0
        %773 = vmatpush1.msra.mxu0 0.0
        %774 = vmatprep.subr.mxu0 0.0
        %775 = vmatpush1.msra.mxu0 0.0
        %776 = vmatprep.subr.mxu0 0.0
        %777 = vmatpush1.msra.mxu0 0.0
        %778 = vmatprep.subr.mxu0 0.0
        %779 = vmatpush1.msra.mxu0 %v563
        %780 = vmatprep.subr.mxu0 0.0
        %781 = vmatpush1.msra.mxu0 %v562
        %782 = vmatprep.subr.mxu0 0.0
        %783 = vmatpush2.msra.mxu0 0.0
        %784 = vmatprep.subr.mxu0 0.0
        %785 = vmatpush2.msra.mxu0 0.0
        %786 = vmatprep.subr.mxu0 0.0
        %787 = vmatpush2.msra.mxu0 0.0
        %788 = vmatprep.subr.mxu0 0.0
        %789 = vmatpush2.msra.mxu0 0.0
        %790 = vmatprep.subr.mxu0 0.0
        %791 = vmatpush2.msra.mxu0 0.0
        %792 = vmatprep.subr.mxu0 0.0
        %793 = vmatpush2.msra.mxu0 0.0
        %794 = vmatprep.subr.mxu0 0.0
        %795 = vmatpush2.msra.mxu0 0.0
        %796 = vmatprep.subr.mxu0 0.0
        %797 = vmatpush2.msra.mxu0 0.0
        %798 = vmatprep.subr.mxu0 0.0
        %799 = vmatpush2.msra.mxu0 0.0
        %800 = vmatprep.subr.mxu0 0.0
        %801 = vmatpush2.msra.mxu0 0.0
        %802 = vmatprep.subr.mxu0 0.0
        %803 = vmatpush2.msra.mxu0 0.0
        %804 = vmatprep.subr.mxu0 0.0
        %805 = vmatpush2.msra.mxu0 0.0
        %806 = vmatprep.subr.mxu0 0.0
        %807 = vmatpush2.msra.mxu0 0.0
        %808 = vmatprep.subr.mxu0 0.0
        %809 = vmatpush2.msra.mxu0 0.0
        %810 = vmatprep.subr.mxu0 0.0
        %811 = vmatpush2.msra.mxu0 0.0
        %812 = vmatprep.subr.mxu0 0.0
        %813 = vmatpush2.msra.mxu0 0.0
        %814 = vmatprep.mubr.f32.mxu0 0.0
        %815 = vmatmul.mubr.f32.gmra.mxu0 %v748
        %v816 = vpop.f32.mrf.mxu0
        %v817 = vadd.f32 0.0, %v816
        %v818 = vpop.f32.mrf.mxu0
        %819 = vdwg.mxu0
        %v820 = vsel %vm312, 1.0, %v817
        %vm821 = vcmask 36864
        %v822 = vsel %vm821, %v820, 0.0
        %823 = vadd.xlane.f32.xlu0 %v822
        %v824 = vpop.xlane.xlu0 %823
        %v825 = vmax.f32 %v824, 1.0
        %v826 = vrsqrt.pop %v825
        %vm827 = vcmask 261120
        %v829 = vsel %vm827, %v674, 0
        %831 = vmatprep.subr.mxu0 0.0
        %832 = vmatpush1.msra.mxu0 0.0
        %833 = vmatprep.subr.mxu0 0.0
        %834 = vmatpush1.msra.mxu0 0.0
        %835 = vmatprep.subr.mxu0 0.0
        %836 = vmatpush1.msra.mxu0 0.0
        %837 = vmatprep.subr.mxu0 0.0
        %838 = vmatpush1.msra.mxu0 0.0
        %839 = vmatprep.subr.mxu0 0.0
        %840 = vmatpush1.msra.mxu0 0.0
        %841 = vmatprep.subr.mxu0 0.0
        %842 = vmatpush1.msra.mxu0 0.0
        %843 = vmatprep.subr.mxu0 0.0
        %844 = vmatpush1.msra.mxu0 0.0
        %845 = vmatprep.subr.mxu0 0.0
        %846 = vmatpush1.msra.mxu0 0.0
        %847 = vmatprep.subr.mxu0 0.0
        %848 = vmatpush1.msra.mxu0 0.0
        %849 = vmatprep.subr.mxu0 0.0
        %850 = vmatpush1.msra.mxu0 0.0
        %851 = vmatprep.subr.mxu0 0.0
        %852 = vmatpush1.msra.mxu0 0.0
        %853 = vmatprep.subr.mxu0 0.0
        %854 = vmatpush1.msra.mxu0 0.0
        %855 = vmatprep.subr.mxu0 0.0
        %856 = vmatpush1.msra.mxu0 %v293
        %857 = vmatprep.subr.mxu0 0.0
        %858 = vmatpush1.msra.mxu0 %v292
        %859 = vmatprep.subr.mxu0 0.0
        %860 = vmatpush1.msra.mxu0 %v291
        %861 = vmatprep.subr.mxu0 0.0
        %862 = vmatpush1.msra.mxu0 %v290
        %863 = vmatprep.subr.mxu0 0.0
        %864 = vmatpush2.msra.mxu0 0.0
        %865 = vmatprep.subr.mxu0 0.0
        %866 = vmatpush2.msra.mxu0 0.0
        %867 = vmatprep.subr.mxu0 0.0
        %868 = vmatpush2.msra.mxu0 0.0
        %869 = vmatprep.subr.mxu0 0.0
        %870 = vmatpush2.msra.mxu0 0.0
        %871 = vmatprep.subr.mxu0 0.0
        %872 = vmatpush2.msra.mxu0 0.0
        %873 = vmatprep.subr.mxu0 0.0
        %874 = vmatpush2.msra.mxu0 0.0
        %875 = vmatprep.subr.mxu0 0.0
        %876 = vmatpush2.msra.mxu0 0.0
        %877 = vmatprep.subr.mxu0 0.0
        %878 = vmatpush2.msra.mxu0 0.0
        %879 = vmatprep.subr.mxu0 0.0
        %880 = vmatpush2.msra.mxu0 0.0
        %881 = vmatprep.subr.mxu0 0.0
        %882 = vmatpush2.msra.mxu0 0.0
        %883 = vmatprep.subr.mxu0 0.0
        %884 = vmatpush2.msra.mxu0 0.0
        %885 = vmatprep.subr.mxu0 0.0
        %886 = vmatpush2.msra.mxu0 0.0
        %887 = vmatprep.subr.mxu0 0.0
        %888 = vmatpush2.msra.mxu0 0.0
        %889 = vmatprep.subr.mxu0 0.0
        %890 = vmatpush2.msra.mxu0 0.0
        %891 = vmatprep.subr.mxu0 0.0
        %892 = vmatpush2.msra.mxu0 0.0
        %893 = vmatprep.subr.mxu0 0.0
        %894 = vmatpush2.msra.mxu0 0.0
        %895 = vmatprep.mubr.f32.mxu0 0.0
        %896 = vmatmul.mubr.f32.gmra.mxu0 %v829
        %v897 = vpop.f32.mrf.mxu0
        %v898 = vadd.f32 0.0, %v897
        %v899 = vpop.f32.mrf.mxu0
        %900 = vdwg.mxu0
        %v901 = vmul.f32 %v826, %v898
        %v903 = vsel %vm328, %v820, 0
        %v906 = vsel %vm335, %v901, 0
        %908 = vmatprep.subr.mxu0 0.0
        %909 = vmatpush1.msra.mxu0 0.0
        %910 = vmatprep.subr.mxu0 0.0
        %911 = vmatpush1.msra.mxu0 0.0
        %912 = vmatprep.subr.mxu0 0.0
        %913 = vmatpush1.msra.mxu0 0.0
        %914 = vmatprep.subr.mxu0 0.0
        %915 = vmatpush1.msra.mxu0 0.0
        %916 = vmatprep.subr.mxu0 0.0
        %917 = vmatpush1.msra.mxu0 0.0
        %918 = vmatprep.subr.mxu0 0.0
        %919 = vmatpush1.msra.mxu0 0.0
        %920 = vmatprep.subr.mxu0 0.0
        %921 = vmatpush1.msra.mxu0 0.0
        %922 = vmatprep.subr.mxu0 0.0
        %923 = vmatpush1.msra.mxu0 0.0
        %924 = vmatprep.subr.mxu0 0.0
        %925 = vmatpush1.msra.mxu0 0.0
        %926 = vmatprep.subr.mxu0 0.0
        %927 = vmatpush1.msra.mxu0 0.0
        %928 = vmatprep.subr.mxu0 0.0
        %929 = vmatpush1.msra.mxu0 0.0
        %930 = vmatprep.subr.mxu0 0.0
        %931 = vmatpush1.msra.mxu0 0.0
        %932 = vmatprep.subr.mxu0 0.0
        %933 = vmatpush1.msra.mxu0 0.0
        %934 = vmatprep.subr.mxu0 0.0
        %935 = vmatpush1.msra.mxu0 0.0
        %936 = vmatprep.subr.mxu0 0.0
        %937 = vmatpush1.msra.mxu0 0.0
        %938 = vmatprep.subr.mxu0 0.0
        %939 = vmatpush1.msra.mxu0 %v906
        %940 = vmatprep.subr.mxu0 0.0
        %941 = vmatpush2.msra.mxu0 0.0
        %942 = vmatprep.subr.mxu0 0.0
        %943 = vmatpush2.msra.mxu0 0.0
        %944 = vmatprep.subr.mxu0 0.0
        %945 = vmatpush2.msra.mxu0 0.0
        %946 = vmatprep.subr.mxu0 0.0
        %947 = vmatpush2.msra.mxu0 0.0
        %948 = vmatprep.subr.mxu0 0.0
        %949 = vmatpush2.msra.mxu0 0.0
        %950 = vmatprep.subr.mxu0 0.0
        %951 = vmatpush2.msra.mxu0 0.0
        %952 = vmatprep.subr.mxu0 0.0
        %953 = vmatpush2.msra.mxu0 0.0
        %954 = vmatprep.subr.mxu0 0.0
        %955 = vmatpush2.msra.mxu0 0.0
        %956 = vmatprep.subr.mxu0 0.0
        %957 = vmatpush2.msra.mxu0 0.0
        %958 = vmatprep.subr.mxu0 0.0
        %959 = vmatpush2.msra.mxu0 0.0
        %960 = vmatprep.subr.mxu0 0.0
        %961 = vmatpush2.msra.mxu0 0.0
        %962 = vmatprep.subr.mxu0 0.0
        %963 = vmatpush2.msra.mxu0 0.0
        %964 = vmatprep.subr.mxu0 0.0
        %965 = vmatpush2.msra.mxu0 0.0
        %966 = vmatprep.subr.mxu0 0.0
        %967 = vmatpush2.msra.mxu0 0.0
        %968 = vmatprep.subr.mxu0 0.0
        %969 = vmatpush2.msra.mxu0 0.0
        %970 = vmatprep.subr.mxu0 0.0
        %971 = vmatpush2.msra.mxu0 0.0
        %972 = vmatprep.mubr.f32.mxu0 0.0
        %973 = vmatmul.mubr.f32.gmra.mxu0 %v903
        %v974 = vpop.f32.mrf.mxu0
        %v975 = vadd.f32 0.0, %v974
        %v976 = vpop.f32.mrf.mxu0
        %977 = vdwg.mxu0
        %v978 = vmul.f32 %v826, %v975
        %v979 = vadd.f32 %v978, %v306
        %vm980 = vcmask 258048
        %v981 = vsel %vm980, %v979, 0.0
        %v982 = vrot.slane %v981, 4
        %v983 = vadd.f32 %v981, %v982
        %v984 = vrot.slane %v983, 2
        %v985 = vadd.f32 %v983, %v984
        %v986 = vrot.slane %v985, 1
        %v987 = vadd.f32 %v985, %v986
        %vm988 = vcmask 253952
        %989 = vst.msk [vmem:[%s278] sm:$0x1] %vm988, %v987
        %s990 = sand.u32 %s172, 1
        %s991 = scalar_lea.sflag [#allocation6], %s990
        %s992 = sand.u32 %s172, 1
        %s993 = scalar_lea.vmem [#allocation7], %s992
        // Predicated region
        $region49: #{tpu_custom_call.1} parent=43 // pred_check
          %p994 = pneg %p182
        $region50: #{tpu_custom_call.1} parent=43 // pred_check_branch
          %996 = sbr.rel (%p994) target = $region52
        $region51: #{tpu_custom_call.1} parent=43 // pred_region
          %s998 = ssub.s32 16, 16
          %999 = vsyncadd %s991, %s998
          %s1000 = smul.addr %s28, 16
          %s1001 = scalar_lea.hbm %s7, %s1000
          %s1003 = sshll.u32 %s993, 4
          %s1004 = int_to_ptr.vmem [resolvable:$true] %s1003
          %1006 = dma.vmem_to_hbm [thread:$0]  %s1004, 16, %s1001, %s991
        $region52: #{tpu_custom_call.1} parent=43 // pred_fallthru
          _
      $region44: #{tpu_custom_call.1} parent=5 // pred_fallthru
        _
      %p1007 = scmp.le.s32.totalorder 2, %s23
      // Predicated region
      $region53: #{tpu_custom_call.1} parent=5 // pred_check
        %p1008 = pneg %p1007
      $region54: #{tpu_custom_call.1} parent=5 // pred_check_branch
        %1010 = sbr.rel (%p1008) target = $region56
      $region55: #{tpu_custom_call.1} parent=5 // pred_region
        %s1011 = ssub.s32 %s23, 2
        // Predicated region
        $region57: #{tpu_custom_call.1} parent=55 // pred_check
          %p1012 = pneg %p188
        $region58: #{tpu_custom_call.1} parent=55 // pred_check_branch
          %1014 = sbr.rel (%p1012) target = $region60
        $region59: #{tpu_custom_call.1} parent=55 // pred_region
          %s1015 = sand.u32 %s173, 1
          %s1016 = scalar_lea.sflag [#allocation6], %s1015
          %s1017 = sand.u32 %s173, 1
          %s1018 = scalar_lea.vmem [#allocation7], %s1017
          %1019 = dma.done %s1016, 16
        $region60: #{tpu_custom_call.1} parent=55 // pred_fallthru
          _
      $region56: #{tpu_custom_call.1} parent=5 // pred_fallthru
        _
    $region6: #{tpu_custom_call.1} parent=1 // loop_footer
      %s27 = sadd.s32 1, %s23
    $region7: #{tpu_custom_call.1} parent=1 // loop_footer_branch
      %22 = sbr.rel target = $region3
    $region8: #{tpu_custom_call.1} parent=1 // loop_exit
      _
    %1020 = vsyncpa [#allocation5], 1
    %s1021 = scalar_lea.sflag [#allocation5], 1
    %1022 = vsyncpa %s1021, 1
    %1023 = vsyncpa [#allocation6], 1
    %s1024 = scalar_lea.sflag [#allocation6], 1
    %1025 = vsyncpa %s1024, 1

</llo_original>
